<compile_context>
chip_gen: v7x
topology: tpu7x:2x2x1
jax: 0.10.0
libtpu: 0.0.40
codegen_flags: <defaults>
</compile_context>

<pallas_src>
import math
import functools

import jax
import jax.numpy as jnp
from jax import lax
from jax.experimental import pallas as pl
from jax.experimental.pallas import tpu as pltpu


def _make_pe(d_model: int, max_len: int) -> jnp.ndarray:
    """Sinusoidal positional-encoding buffer, shape [max_len, 1, d_model]."""
    position = jnp.arange(max_len, dtype=jnp.float32)[:, None]          # [max_len, 1]
    div_term = jnp.exp(
        jnp.arange(0, d_model, 2, dtype=jnp.float32)
        * (-math.log(10000.0) / d_model)
    )                                                                    # [d_model//2]
    pe = jnp.zeros((max_len, 1, d_model), dtype=jnp.float32)
    pe = pe.at[:, 0, 0::2].set(jnp.sin(position * div_term))
    pe = pe.at[:, 0, 1::2].set(jnp.cos(position * div_term))
    return pe


def _keep_threshold(p: float) -> int:
    """uint32 threshold: keep element iff bits >= threshold (P(keep) = 1 - p)."""
    return min(int(round(p * float(2 ** 32))), 2 ** 32 - 1)


def _dropout_bits(key, shape) -> jnp.ndarray:
    """Raw uint32 random bits driving the dropout mask (one word per element)."""
    return jax.random.bits(key, shape, dtype=jnp.uint32)


def _pick_tile_s(S: int, B: int, D: int, itemsize: int) -> int:
    """Rows per block: biggest tile under a ~4 MiB/buffer budget (Pallas
    double-buffers each operand, so total stays far below v7x's VMEM)."""
    bytes_per_row = B * D * (2 * itemsize + 4)          # x + out + uint32 bits
    budget = 4 * 1024 * 1024
    tile = max(1, min(S, budget // max(1, bytes_per_row)))
    if tile >= 8:
        tile -= tile % 8                                # friendlier sublane multiple
    return tile


def _pe_dropout_kernel(x_ref, pe_ref, bits_ref, o_ref, *, threshold: int, scale: float):
    # (TILE_S, B, D) + (TILE_S, 1, D): batch broadcast happens on the VPU,
    # hidden under the DMA of x/bits (kernel is HBM-bandwidth bound).
    y = x_ref[...] + pe_ref[...]
    # Integer-threshold dropout: no bits->float conversion, scale folded in.
    keep = bits_ref[...] >= jnp.uint32(threshold)
    o_ref[...] = jnp.where(keep, y * scale, jnp.zeros_like(y)).astype(o_ref.dtype)


def positional_encoding_forward(
    x: jnp.ndarray,
    pe: jnp.ndarray,
    *,
    p: float = 0.1,
    training: bool = True,
    rng: jax.Array | None = None,
) -> jnp.ndarray:
    """x: [S, B, D]; pe: [max_len, 1, D].  Returns dropout(x + pe[:S])."""
    S, B, D = x.shape
    pe_slice = lax.slice(pe, (0, 0, 0), (S, 1, D)).astype(x.dtype)  # pe[:S], x's dtype

    if (not training) or p <= 0.0:
        # Eval path: pure broadcasted add; XLA fuses this optimally — no kernel.
        return x + pe_slice

    if rng is None:
        rng = jax.random.PRNGKey(0)
    bits = _dropout_bits(rng, (S, B, D))
    threshold = _keep_threshold(p)
    scale = 1.0 / (1.0 - p)

    tile_s = _pick_tile_s(S, B, D, jnp.dtype(x.dtype).itemsize)
    grid = (pl.cdiv(S, tile_s),)

    kernel = functools.partial(_pe_dropout_kernel, threshold=threshold, scale=scale)

    return pl.pallas_call(
        kernel,
        out_shape=jax.ShapeDtypeStruct((S, B, D), x.dtype),
        grid=grid,
        in_specs=[
            pl.BlockSpec((tile_s, B, D), lambda i: (i, 0, 0)),   # x
            pl.BlockSpec((tile_s, 1, D), lambda i: (i, 0, 0)),   # pe (un-broadcast)
            pl.BlockSpec((tile_s, B, D), lambda i: (i, 0, 0)),   # dropout bits
        ],
        out_specs=pl.BlockSpec((tile_s, B, D), lambda i: (i, 0, 0)),
        compiler_params=pltpu.CompilerParams(
            dimension_semantics=("parallel",),          # shard rows over v7x's 2 TCs
            vmem_limit_bytes=32 * 1024 * 1024,          # safe on v5e/v6e/v7x
        ),
    )(x, pe_slice, bits)


if __name__ == "__main__":
    d_model = 32
    max_len = 64
    seq_len = 8
    batch = 2
    p = 0.1

    key = jax.random.PRNGKey(0)
    kx, kd = jax.random.split(key)
    x = jax.random.normal(kx, (seq_len, batch, d_model), dtype=jnp.float32)
    pe = _make_pe(d_model, max_len)

    # Eval-mode path (deterministic, plain JAX add per the perf review).
    out_eval = positional_encoding_forward(x, pe, p=p, training=False)
    out_eval = jax.block_until_ready(out_eval)
    ref_eval = x + pe[:seq_len]
    assert out_eval.shape == (seq_len, batch, d_model)
    assert jnp.allclose(out_eval, ref_eval, atol=1e-6, rtol=1e-6)

    # Training-mode path: Pallas kernel (add + inverted dropout).
    out_train = positional_encoding_forward(x, pe, p=p, training=True, rng=kd)
    out_train = jax.block_until_ready(out_train)
    assert out_train.shape == (seq_len, batch, d_model)

    # Exact reference using the same dropout bits the wrapper generated.
    bits_ref = _dropout_bits(kd, (seq_len, batch, d_model))
    keep_ref = bits_ref >= jnp.uint32(_keep_threshold(p))
    ref_train = jnp.where(keep_ref, (x + pe[:seq_len]) * (1.0 / (1.0 - p)), 0.0)
    assert jnp.allclose(out_train, ref_train, atol=1e-5, rtol=1e-5)

    print("KERNEL_OK")
</pallas_src>

<mosaic_0001>
module attributes {stable_mosaic.version = 11 : i64} {
  func.func @_pe_dropout_kernel(%arg0: i32, %arg1: memref<8x2x32xf32, #tpu.memory_space<vmem>>, %arg2: memref<8x1x32xf32, #tpu.memory_space<vmem>>, %arg3: memref<8x2x32xi32, #tpu.memory_space<vmem>>, %arg4: memref<8x2x32xf32, #tpu.memory_space<vmem>>) attributes {dimension_semantics = [#tpu.dimension_semantics<parallel>], iteration_bounds = array<i64: 1>, scalar_prefetch = 0 : i64, scratch_operands = 0 : i64, tpu.core_type = #tpu.core_type<tc>, window_params = [{transform_indices = @transform_0, window_bounds = array<i64: 8, 2, 32>}, {transform_indices = @transform_1, window_bounds = array<i64: 8, 1, 32>}, {transform_indices = @transform_2, window_bounds = array<i64: 8, 2, 32>}, {transform_indices = @transform_3, window_bounds = array<i64: 8, 2, 32>}]} {
    %c0 = arith.constant 0 : index
    %c0_0 = arith.constant 0 : index
    %c0_1 = arith.constant 0 : index
    %0 = vector.load %arg1[%c0, %c0_0, %c0_1] : memref<8x2x32xf32, #tpu.memory_space<vmem>>, vector<8x2x32xf32>
    %c0_2 = arith.constant 0 : index
    %c0_3 = arith.constant 0 : index
    %c0_4 = arith.constant 0 : index
    %1 = vector.load %arg2[%c0_2, %c0_3, %c0_4] : memref<8x1x32xf32, #tpu.memory_space<vmem>>, vector<8x1x32xf32>
    %2 = vector.broadcast %1 : vector<8x1x32xf32> to vector<8x2x32xf32>
    %3 = arith.addf %0, %2 : vector<8x2x32xf32>
    %c0_5 = arith.constant 0 : index
    %c0_6 = arith.constant 0 : index
    %c0_7 = arith.constant 0 : index
    %4 = vector.load %arg3[%c0_5, %c0_6, %c0_7] : memref<8x2x32xi32, #tpu.memory_space<vmem>>, vector<8x2x32xi32>
    %c429496730_i32 = arith.constant 429496730 : i32
    %5 = vector.broadcast %c429496730_i32 : i32 to vector<8x2x32xi32>
    %6 = arith.cmpi uge, %4, %5 : vector<8x2x32xi32>
    %cst = arith.constant 1.11111116 : f32
    %7 = vector.broadcast %cst : f32 to vector<8x2x32xf32>
    %8 = arith.mulf %3, %7 : vector<8x2x32xf32>
    %cst_8 = arith.constant 0.000000e+00 : f32
    %9 = vector.broadcast %cst_8 : f32 to vector<8x2x32xf32>
    %10 = arith.select %6, %8, %9 : vector<8x2x32xi1>, vector<8x2x32xf32>
    %c0_9 = arith.constant 0 : index
    %c0_10 = arith.constant 0 : index
    %c0_11 = arith.constant 0 : index
    %11 = vector.load %arg4[%c0_9, %c0_10, %c0_11] : memref<8x2x32xf32, #tpu.memory_space<vmem>>, vector<8x2x32xf32>
    tpu.vector_store %arg4[%c0_9, %c0_10, %c0_11], %10 {strides = array<i32>} : memref<8x2x32xf32, #tpu.memory_space<vmem>>, vector<8x2x32xf32>,
    return
  }
  func.func @transform_0(%arg0: i32) -> (i32, i32, i32) {
    %c0_i32 = arith.constant 0 : i32
    %c0_i32_0 = arith.constant 0 : i32
    %c0_i32_1 = arith.constant 0 : i32
    return %arg0, %c0_i32, %c0_i32_0 : i32, i32, i32
  }
  func.func @transform_1(%arg0: i32) -> (i32, i32, i32) {
    %c0_i32 = arith.constant 0 : i32
    %c0_i32_0 = arith.constant 0 : i32
    %c0_i32_1 = arith.constant 0 : i32
    return %arg0, %c0_i32, %c0_i32_0 : i32, i32, i32
  }
  func.func @transform_2(%arg0: i32) -> (i32, i32, i32) {
    %c0_i32 = arith.constant 0 : i32
    %c0_i32_0 = arith.constant 0 : i32
    %c0_i32_1 = arith.constant 0 : i32
    return %arg0, %c0_i32, %c0_i32_0 : i32, i32, i32
  }
  func.func @transform_3(%arg0: i32) -> (i32, i32, i32) {
    %c0_i32 = arith.constant 0 : i32
    %c0_i32_0 = arith.constant 0 : i32
    %c0_i32_1 = arith.constant 0 : i32
    return %arg0, %c0_i32, %c0_i32_0 : i32, i32, i32
  }
}

</mosaic_0001>

<llo_original>
// kernel: tpu_custom_call.1
$region0: #{tpu_custom_call.1}
  #allocation0 [shape = 'u32[]', space=smem, size = 0x4, offset = 0x4, fixed_abs, tag = 'smem constant byte address 0x4 - core index']
  #allocation1 [shape = 'u32[144,128]{1,0:T(1,128)}', space=vmem, size = 0x12000, scoped, tag = 'internal scratch']
  %s0 = inlined_call_operand.hbm [shape: f32[8,2,32], index: 0, kind: input, shape index: {}]
  %s1 = inlined_call_operand.hbm [shape: f32[8,1,32], index: 1, kind: input, shape index: {}]
  %s2 = inlined_call_operand.hbm [shape: u32[8,2,32], index: 2, kind: input, shape index: {}]
  %s3 = inlined_call_operand.hbm [shape: f32[8,2,32], index: 3, kind: output, shape index: {}]
  %s4 = sld [smem:[#allocation0]]
  $region34: #{tpu_custom_call.1} parent=0
    _
  %s6 = ssub.s32 1, %s4
  %s7 = scalar_select 0, %s6, %s4
  $region1: #{tpu_custom_call.1} parent=0
    #allocation2 [shape = 'u8[8192]{0}', space=vmem, size = 0x2000, scoped, tag = 'input window, operand 0, single buffered']
    #allocation3 [shape = 's32[1]{0}', space=sflag, size = 0x4, scoped, tag = 'scoped memory for tpu_custom_call.1']
    #allocation4 [shape = 's32[1]{0}', space=sflag, size = 0x4, scoped, tag = 'scoped memory for tpu_custom_call.1']
    #allocation5 [shape = 'u8[4096]{0}', space=vmem, size = 0x1000, scoped, tag = 'input window, operand 1, single buffered']
    #allocation6 [shape = 's32[1]{0}', space=sflag, size = 0x4, scoped, tag = 'scoped memory for tpu_custom_call.1']
    #allocation7 [shape = 'u8[8192]{0}', space=vmem, size = 0x2000, scoped, tag = 'input window, operand 2, single buffered']
    #allocation8 [shape = 'u8[8192]{0}', space=vmem, size = 0x2000, scoped, tag = 'output window, operand 0, single buffered']
    %8 = vsyncpa [#allocation3], 0
    %9 = vsyncpa [#allocation6], 0
    %10 = vsyncpa [#allocation4], 0
    // Predicated region
    $region2: #{tpu_custom_call.1} parent=1 // pred_check
      _
    $region3: #{tpu_custom_call.1} parent=1 // pred_check_branch
      %12 = sbr.rel (0) target = $region5
    $region4: #{tpu_custom_call.1} parent=1 // pred_region
      %s14 = ssub.s32 256, 256
      %15 = vsyncadd [#allocation3], %s14
      %s16 = sshll.u32 [#allocation2], 4
      %s17 = int_to_ptr.vmem [resolvable:$true] %s16
      %22 = dma.hbm_to_vmem [thread:$0]  %s0, 256, %s17, [#allocation3], 32, 32, 2
    $region5: #{tpu_custom_call.1} parent=1 // pred_fallthru
      _
    // Predicated region
    $region6: #{tpu_custom_call.1} parent=1 // pred_check
      _
    $region7: #{tpu_custom_call.1} parent=1 // pred_check_branch
      %24 = sbr.rel (0) target = $region9
    $region8: #{tpu_custom_call.1} parent=1 // pred_region
      %s26 = ssub.s32 128, 128
      %27 = vsyncadd [#allocation6], %s26
      %s28 = sshll.u32 [#allocation5], 4
      %s29 = int_to_ptr.vmem [resolvable:$true] %s28
      %34 = dma.hbm_to_vmem [thread:$0]  %s1, 128, %s29, [#allocation6], 16, 16, 1
    $region9: #{tpu_custom_call.1} parent=1 // pred_fallthru
      _
    // Predicated region
    $region10: #{tpu_custom_call.1} parent=1 // pred_check
      _
    $region11: #{tpu_custom_call.1} parent=1 // pred_check_branch
      %36 = sbr.rel (0) target = $region13
    $region12: #{tpu_custom_call.1} parent=1 // pred_region
      %s38 = ssub.s32 256, 256
      %39 = vsyncadd [#allocation6], %s38
      %s40 = sshll.u32 [#allocation7], 4
      %s41 = int_to_ptr.vmem [resolvable:$true] %s40
      %46 = dma.hbm_to_vmem [thread:$0]  %s2, 256, %s41, [#allocation6], 32, 32, 2
    $region13: #{tpu_custom_call.1} parent=1 // pred_fallthru
      _
    // Predicated region
    $region14: #{tpu_custom_call.1} parent=1 // pred_check
      _
    $region15: #{tpu_custom_call.1} parent=1 // pred_check_branch
      %48 = sbr.rel (0) target = $region17
    $region16: #{tpu_custom_call.1} parent=1 // pred_region
      %49 = dma.done [#allocation3], 256
    $region17: #{tpu_custom_call.1} parent=1 // pred_fallthru
      _
    // Predicated region
    $region18: #{tpu_custom_call.1} parent=1 // pred_check
      _
    $region19: #{tpu_custom_call.1} parent=1 // pred_check_branch
      %51 = sbr.rel (0) target = $region21
    $region20: #{tpu_custom_call.1} parent=1 // pred_region
      %52 = dma.done [#allocation6], 128
    $region21: #{tpu_custom_call.1} parent=1 // pred_fallthru
      _
    // Predicated region
    $region22: #{tpu_custom_call.1} parent=1 // pred_check
      _
    $region23: #{tpu_custom_call.1} parent=1 // pred_check_branch
      %54 = sbr.rel (0) target = $region25
    $region24: #{tpu_custom_call.1} parent=1 // pred_region
      %55 = dma.done [#allocation6], 256
    $region25: #{tpu_custom_call.1} parent=1 // pred_fallthru
      _
    %v56 = vld [vmem:[#allocation2] sm:$0x3]
    %v57 = vld [vmem:[#allocation2 + $0x2] sm:$0x3]
    %v58 = vld [vmem:[#allocation2 + $0x4] sm:$0x3]
    %v59 = vld [vmem:[#allocation2 + $0x6] sm:$0x3]
    %v60 = vld [vmem:[#allocation2 + $0x8] sm:$0x3]
    %v61 = vld [vmem:[#allocation2 + $0xa] sm:$0x3]
    %v62 = vld [vmem:[#allocation2 + $0xc] sm:$0x3]
    %v63 = vld [vmem:[#allocation2 + $0xe] sm:$0x3]
    %v64 = vld [vmem:[#allocation5] sm:$0x1]
    %v65 = vld [vmem:[#allocation5 + $0x1] sm:$0x1]
    %v66 = vld [vmem:[#allocation5 + $0x2] sm:$0x1]
    %v67 = vld [vmem:[#allocation5 + $0x3] sm:$0x1]
    %v68 = vld [vmem:[#allocation5 + $0x4] sm:$0x1]
    %v69 = vld [vmem:[#allocation5 + $0x5] sm:$0x1]
    %v70 = vld [vmem:[#allocation5 + $0x6] sm:$0x1]
    %v71 = vld [vmem:[#allocation5 + $0x7] sm:$0x1]
    %v80 = vlaneseq
    %v81 = vshrl.u32 %v80, 7
    %v82 = vsub.s32 0, %v81
    %v83 = vrot.slane %v64, %v82
    %v84 = vlaneseq
    %v85 = vshrl.u32 %v84, 7
    %v86 = vsub.s32 0, %v85
    %v87 = vrot.slane %v65, %v86
    %v88 = vlaneseq
    %v89 = vshrl.u32 %v88, 7
    %v90 = vsub.s32 0, %v89
    %v91 = vrot.slane %v66, %v90
    %v92 = vlaneseq
    %v93 = vshrl.u32 %v92, 7
    %v94 = vsub.s32 0, %v93
    %v95 = vrot.slane %v67, %v94
    %v96 = vlaneseq
    %v97 = vshrl.u32 %v96, 7
    %v98 = vsub.s32 0, %v97
    %v99 = vrot.slane %v68, %v98
    %v100 = vlaneseq
    %v101 = vshrl.u32 %v100, 7
    %v102 = vsub.s32 0, %v101
    %v103 = vrot.slane %v69, %v102
    %v104 = vlaneseq
    %v105 = vshrl.u32 %v104, 7
    %v106 = vsub.s32 0, %v105
    %v107 = vrot.slane %v70, %v106
    %v108 = vlaneseq
    %v109 = vshrl.u32 %v108, 7
    %v110 = vsub.s32 0, %v109
    %v111 = vrot.slane %v71, %v110
    %v120 = vadd.f32 %v56, %v83
    %v121 = vadd.f32 %v57, %v87
    %v122 = vadd.f32 %v58, %v91
    %v123 = vadd.f32 %v59, %v95
    %v124 = vadd.f32 %v60, %v99
    %v125 = vadd.f32 %v61, %v103
    %v126 = vadd.f32 %v62, %v107
    %v127 = vadd.f32 %v63, %v111
    %v128 = vld [vmem:[#allocation7] sm:$0x3]
    %v129 = vld [vmem:[#allocation7 + $0x2] sm:$0x3]
    %v130 = vld [vmem:[#allocation7 + $0x4] sm:$0x3]
    %v131 = vld [vmem:[#allocation7 + $0x6] sm:$0x3]
    %v132 = vld [vmem:[#allocation7 + $0x8] sm:$0x3]
    %v133 = vld [vmem:[#allocation7 + $0xa] sm:$0x3]
    %v134 = vld [vmem:[#allocation7 + $0xc] sm:$0x3]
    %v135 = vld [vmem:[#allocation7 + $0xe] sm:$0x3]
    %vm136 = vcmp.ge.u32.totalorder %v128, 429496730
    %vm137 = vcmp.ge.u32.totalorder %v129, 429496730
    %vm138 = vcmp.ge.u32.totalorder %v130, 429496730
    %vm139 = vcmp.ge.u32.totalorder %v131, 429496730
    %vm140 = vcmp.ge.u32.totalorder %v132, 429496730
    %vm141 = vcmp.ge.u32.totalorder %v133, 429496730
    %vm142 = vcmp.ge.u32.totalorder %v134, 429496730
    %vm143 = vcmp.ge.u32.totalorder %v135, 429496730
    %v144 = vmul.f32 %v120, 1.1111112
    %v145 = vmul.f32 %v121, 1.1111112
    %v146 = vmul.f32 %v122, 1.1111112
    %v147 = vmul.f32 %v123, 1.1111112
    %v148 = vmul.f32 %v124, 1.1111112
    %v149 = vmul.f32 %v125, 1.1111112
    %v150 = vmul.f32 %v126, 1.1111112
    %v151 = vmul.f32 %v127, 1.1111112
    %v152 = vsel %vm136, %v144, 0.0
    %v153 = vsel %vm137, %v145, 0.0
    %v154 = vsel %vm138, %v146, 0.0
    %v155 = vsel %vm139, %v147, 0.0
    %v156 = vsel %vm140, %v148, 0.0
    %v157 = vsel %vm141, %v149, 0.0
    %v158 = vsel %vm142, %v150, 0.0
    %v159 = vsel %vm143, %v151, 0.0
    %vm160 = vcmask 254976
    %161 = vst.msk [vmem:[#allocation8] sm:$0x3] %vm160, %v152
    %162 = vst.msk [vmem:[#allocation8 + $0x2] sm:$0x3] %vm160, %v153
    %163 = vst.msk [vmem:[#allocation8 + $0x4] sm:$0x3] %vm160, %v154
    %164 = vst.msk [vmem:[#allocation8 + $0x6] sm:$0x3] %vm160, %v155
    %165 = vst.msk [vmem:[#allocation8 + $0x8] sm:$0x3] %vm160, %v156
    %166 = vst.msk [vmem:[#allocation8 + $0xa] sm:$0x3] %vm160, %v157
    %167 = vst.msk [vmem:[#allocation8 + $0xc] sm:$0x3] %vm160, %v158
    %168 = vst.msk [vmem:[#allocation8 + $0xe] sm:$0x3] %vm160, %v159
    // Predicated region
    $region26: #{tpu_custom_call.1} parent=1 // pred_check
      _
    $region27: #{tpu_custom_call.1} parent=1 // pred_check_branch
      %170 = sbr.rel (0) target = $region29
    $region28: #{tpu_custom_call.1} parent=1 // pred_region
      %s172 = ssub.s32 256, 256
      %173 = vsyncadd [#allocation4], %s172
      %s174 = sshll.u32 [#allocation8], 4
      %s175 = int_to_ptr.vmem [resolvable:$true] %s174
      %180 = dma.vmem_to_hbm [thread:$0]  %s175, 256, %s3, [#allocation4], 32, 32, 2
    $region29: #{tpu_custom_call.1} parent=1 // pred_fallthru
      _
    // Predicated region
    $region30: #{tpu_custom_call.1} parent=1 // pred_check
      _
    $region31: #{tpu_custom_call.1} parent=1 // pred_check_branch
      %182 = sbr.rel (0) target = $region33
    $region32: #{tpu_custom_call.1} parent=1 // pred_region
      %183 = dma.done [#allocation4], 256
    $region33: #{tpu_custom_call.1} parent=1 // pred_fallthru
      _
    %184 = vsyncpa [#allocation3], 1
    %185 = vsyncpa [#allocation6], 1
    %186 = vsyncpa [#allocation4], 1

</llo_original>
